<compile_context>
chip_gen: v6e
topology: v6e:2x2x1
jax: 0.10.0
libtpu: 0.0.40
codegen_flags: <defaults>
</compile_context>

<pallas_src>
import functools

import jax
import jax.numpy as jnp
from jax.experimental import pallas as pl
from jax.experimental.pallas import tpu as pltpu


_SMALL_BATCH_XLA_THRESHOLD = 1024   # below this, plain XLA beats pallas_call overhead
_MAX_TILE_B = 65536                 # ~192 B/lane double-buffered -> <12 MiB VMEM (fits
                                    # v5e 16 MiB / v6e 32 MiB / v7x 32 MiB scoped default)


def _round_up(x, m):
    return ((x + m - 1) // m) * m


def _round_down(x, m):
    return (x // m) * m


def _mlp_t_kernel(x_ref, w1_ref, b1_ref, w2_ref, b2_ref, o_ref):
    # fc1 (transposed): (H, F) @ (F, TILE_B) -> (H, TILE_B), f32 MXU accumulation.
    h = jnp.dot(w1_ref[...], x_ref[...], preferred_element_type=jnp.float32)
    # Bias + ReLU in f32 on the VPU.  Bias block is (H, 1): broadcasts over lanes.
    h = jnp.maximum(h + b1_ref[...], 0.0)
    # fc2 (transposed): (F, H) @ (H, TILE_B) -> (F, TILE_B).  Downcast the activation
    # only when the low-precision compute dtype was chosen explicitly in the wrapper.
    if w2_ref.dtype == jnp.bfloat16:
        h = h.astype(jnp.bfloat16)
    y = jnp.dot(w2_ref[...], h, preferred_element_type=jnp.float32)
    o_ref[...] = (y + b2_ref[...]).astype(o_ref.dtype)


def _choose_tile(batch, tile_b):
    """Pick a lane-axis (batch) tile: multiple of 128, large enough to amortize the
    ~0.35 us per-step pipeline cost, small enough to fit scoped VMEM everywhere, and
    leaving >= 2 grid steps when possible so v7x's 2nd TensorCore has work."""
    b128 = _round_up(max(batch, 1), 128)
    tile = min(max(128, _round_down(tile_b, 128)), _MAX_TILE_B, b128)
    if b128 >= 256:
        tile = min(tile, max(128, _round_down(b128 // 2, 128)))
    b_pad = _round_up(batch, tile)
    return tile, b_pad


def _pallas_mlp_t(x_t, w1c, b1_2d, w2c, b2_2d, *, tile_b, out_dtype):
    """x_t: (F, b_pad) with b_pad a multiple of tile_b. Returns (F, b_pad)."""
    F, b_pad = x_t.shape
    H = w1c.shape[0]
    grid = (b_pad // tile_b,)

    in_item = jnp.dtype(x_t.dtype).itemsize
    out_item = jnp.dtype(out_dtype).itemsize
    cost = pl.CostEstimate(
        flops=2 * b_pad * (F * H + H * F),
        transcendentals=0,
        bytes_accessed=(x_t.size * in_item
                        + (w1c.size + w2c.size) * in_item     # resident, moved once
                        + (b1_2d.size + b2_2d.size) * 4
                        + F * b_pad * out_item),
    )

    return pl.pallas_call(
        _mlp_t_kernel,
        out_shape=jax.ShapeDtypeStruct((F, b_pad), out_dtype),
        grid_spec=pltpu.PrefetchScalarGridSpec(
            num_scalar_prefetch=0,
            grid=grid,
            in_specs=[
                # x^T tile marches along the batch (lane) axis.
                pl.BlockSpec((F, tile_b), lambda i: (0, i)),
                # Weights / biases: constant index_map -> stay VMEM-resident.
                # (pipeline_mode=pl.Buffered(1) would save a few KiB; skipped - low prio.)
                pl.BlockSpec((H, F), lambda i: (0, 0)),
                pl.BlockSpec((H, 1), lambda i: (0, 0)),
                pl.BlockSpec((F, H), lambda i: (0, 0)),
                pl.BlockSpec((F, 1), lambda i: (0, 0)),
            ],
            out_specs=pl.BlockSpec((F, tile_b), lambda i: (0, i)),
        ),
        compiler_params=pltpu.CompilerParams(
            dimension_semantics=("parallel",)),
        cost_estimate=cost,
    )(x_t, w1c, b1_2d, w2c, b2_2d)


def binary_selection_net_t(x_t, w1, b1, w2, b2, *, tile_b=16384,
                           compute_dtype=jnp.bfloat16, out_dtype=None):
    """Preferred feature-major entry point (no relayout HBM passes).

    x_t : (F, B)  feature-major input
    w1  : (H, F)  fc1.weight (PyTorch layout), b1: (H,)
    w2  : (F, H)  fc2.weight (PyTorch layout), b2: (F,)
    returns (F, B)
    """
    F, B = x_t.shape
    H = w1.shape[0]
    assert w1.shape == (H, F) and b1.shape == (H,)
    assert w2.shape == (F, H) and b2.shape == (F,)

    out_dtype = out_dtype if out_dtype is not None else x_t.dtype
    cdt = compute_dtype if compute_dtype is not None else x_t.dtype

    tile, b_pad = _choose_tile(B, tile_b)

    # Cast (matmul operands only) and pad batch lanes; under jit these fuse into a
    # single producer pass.  Biases stay f32 for the VPU epilogue.
    xc = x_t.astype(cdt)
    if b_pad != B:
        xc = jnp.pad(xc, ((0, 0), (0, b_pad - B)))

    out_t = _pallas_mlp_t(
        xc,
        w1.astype(cdt), b1.reshape(H, 1).astype(jnp.float32),
        w2.astype(cdt), b2.reshape(F, 1).astype(jnp.float32),
        tile_b=tile, out_dtype=out_dtype)

    # Padded lanes hold relu(b1)-derived garbage; slice them off.
    return out_t[:, :B] if b_pad != B else out_t


def binary_selection_net(x, w1, b1, w2, b2, *, tile_b=16384,
                         compute_dtype=jnp.bfloat16, out_dtype=None,
                         use_pallas=None):
    """PyTorch-layout forward: x (B, F) -> (B, F).

    For small batches (or use_pallas=False) this falls back to plain XLA: at
    ~20 KFLOP the pallas_call fixed cost dominates and XLA fuses the tiny MLP better.
    For large batches prefer `binary_selection_net_t` and keep activations
    feature-major in the surrounding model to avoid the transpose HBM passes.
    """
    B, F = x.shape
    out_dtype = out_dtype if out_dtype is not None else x.dtype
    if use_pallas is None:
        use_pallas = B > _SMALL_BATCH_XLA_THRESHOLD
    if not use_pallas:
        h = jnp.maximum(x @ w1.T + b1, 0.0)
        return (h @ w2.T + b2).astype(out_dtype)

    out_t = binary_selection_net_t(
        x.T, w1, b1, w2, b2,
        tile_b=tile_b, compute_dtype=compute_dtype, out_dtype=out_dtype)
    return out_t.T


def init_params(key, n_features=10, hidden=64, dtype=jnp.float32):
    """Deterministic init mimicking PyTorch nn.Linear defaults, PyTorch layout."""
    k1, k2, k3, k4 = jax.random.split(key, 4)
    bound1 = 1.0 / (n_features ** 0.5)
    bound2 = 1.0 / (hidden ** 0.5)
    w1 = jax.random.uniform(k1, (hidden, n_features), dtype, -bound1, bound1)
    b1 = jax.random.uniform(k2, (hidden,), dtype, -bound1, bound1)
    w2 = jax.random.uniform(k3, (n_features, hidden), dtype, -bound2, bound2)
    b2 = jax.random.uniform(k4, (n_features,), dtype, -bound2, bound2)
    return w1, b1, w2, b2


def _reference(x, w1, b1, w2, b2):
    return jnp.maximum(x @ w1.T + b1, 0.0) @ w2.T + b2


if __name__ == "__main__":
    n_features = 10
    hidden = 64

    key = jax.random.PRNGKey(0)
    k_x, k_p = jax.random.split(key)
    w1, b1, w2, b2 = init_params(k_p, n_features=n_features, hidden=hidden)

    # 1) Inference-size batch: auto fast path (plain XLA), exact vs reference.
    x_small = jax.random.normal(k_x, (8, n_features), jnp.float32)
    out_small = jax.block_until_ready(binary_selection_net(x_small, w1, b1, w2, b2))
    assert out_small.shape == (8, n_features)
    assert jnp.allclose(out_small, _reference(x_small, w1, b1, w2, b2),
                        atol=1e-5, rtol=1e-5)

    # 2) Pallas path, f32 matmul operands: exercises grid > 1 + batch padding
    #    (B=640 -> tile 256, b_pad 768, grid 3), tight tolerance.
    x_med = jax.random.normal(k_x, (640, n_features), jnp.float32)
    run_f32 = jax.jit(functools.partial(
        binary_selection_net, use_pallas=True, compute_dtype=jnp.float32))
    out_f32 = jax.block_until_ready(run_f32(x_med, w1, b1, w2, b2))
    assert out_f32.shape == (640, n_features)
    assert jnp.allclose(out_f32, _reference(x_med, w1, b1, w2, b2),
                        atol=1e-4, rtol=1e-4)

    # 3) Pallas path, default bf16 matmul operands (f32 accumulation): relaxed tol.
    run_bf16 = jax.jit(functools.partial(binary_selection_net, use_pallas=True))
    out_bf16 = jax.block_until_ready(run_bf16(x_med, w1, b1, w2, b2))
    assert out_bf16.shape == (640, n_features)
    assert jnp.allclose(out_bf16, _reference(x_med, w1, b1, w2, b2),
                        atol=5e-2, rtol=5e-2)

    print("KERNEL_OK")
</pallas_src>

<mosaic_0001>
module attributes {stable_mosaic.version = 11 : i64} {
  func.func @_mlp_t_kernel(%arg0: i32, %arg1: memref<10x256xf32, #tpu.memory_space<vmem>>, %arg2: memref<64x10xf32, #tpu.memory_space<vmem>>, %arg3: memref<64x1xf32, #tpu.memory_space<vmem>>, %arg4: memref<10x64xf32, #tpu.memory_space<vmem>>, %arg5: memref<10x1xf32, #tpu.memory_space<vmem>>, %arg6: memref<10x256xf32, #tpu.memory_space<vmem>>) attributes {dimension_semantics = [#tpu.dimension_semantics<parallel>], iteration_bounds = array<i64: 3>, scalar_prefetch = 0 : i64, scratch_operands = 0 : i64, tpu.core_type = #tpu.core_type<tc>, window_params = [{transform_indices = @transform_0, window_bounds = array<i64: 10, 256>}, {pipeline_mode = #tpu.pipeline_mode<synchronous>, transform_indices = @transform_1, window_bounds = array<i64: 64, 10>}, {pipeline_mode = #tpu.pipeline_mode<synchronous>, transform_indices = @transform_2, window_bounds = array<i64: 64, 1>}, {pipeline_mode = #tpu.pipeline_mode<synchronous>, transform_indices = @transform_3, window_bounds = array<i64: 10, 64>}, {pipeline_mode = #tpu.pipeline_mode<synchronous>, transform_indices = @transform_4, window_bounds = array<i64: 10, 1>}, {transform_indices = @transform_5, window_bounds = array<i64: 10, 256>}]} {
    %c0 = arith.constant 0 : index
    %c0_0 = arith.constant 0 : index
    %0 = vector.load %arg2[%c0, %c0_0] : memref<64x10xf32, #tpu.memory_space<vmem>>, vector<64x10xf32>
    %c0_1 = arith.constant 0 : index
    %c0_2 = arith.constant 0 : index
    %1 = vector.load %arg1[%c0_1, %c0_2] : memref<10x256xf32, #tpu.memory_space<vmem>>, vector<10x256xf32>
    %cst = arith.constant dense<0.000000e+00> : vector<64x256xf32>
    %2 = tpu.matmul %0, %1, %cst {dimension_numbers = #tpu.dot_dimension_numbers<[1], [0], [0], [1], [0, 0, 1, 1], [], []>} : vector<64x10xf32>, vector<10x256xf32>, vector<64x256xf32> -> vector<64x256xf32>
    %c0_3 = arith.constant 0 : index
    %c0_4 = arith.constant 0 : index
    %3 = vector.load %arg3[%c0_3, %c0_4] : memref<64x1xf32, #tpu.memory_space<vmem>>, vector<64x1xf32>
    %4 = vector.broadcast %3 : vector<64x1xf32> to vector<64x256xf32>
    %5 = arith.addf %2, %4 : vector<64x256xf32>
    %cst_5 = arith.constant 0.000000e+00 : f32
    %6 = vector.broadcast %cst_5 : f32 to vector<64x256xf32>
    %7 = arith.maximumf %5, %6 : vector<64x256xf32>
    %c0_6 = arith.constant 0 : index
    %c0_7 = arith.constant 0 : index
    %8 = vector.load %arg4[%c0_6, %c0_7] : memref<10x64xf32, #tpu.memory_space<vmem>>, vector<10x64xf32>
    %cst_8 = arith.constant dense<0.000000e+00> : vector<10x256xf32>
    %9 = tpu.matmul %8, %7, %cst_8 {dimension_numbers = #tpu.dot_dimension_numbers<[1], [0], [0], [1], [0, 0, 1, 1], [], []>} : vector<10x64xf32>, vector<64x256xf32>, vector<10x256xf32> -> vector<10x256xf32>
    %c0_9 = arith.constant 0 : index
    %c0_10 = arith.constant 0 : index
    %10 = vector.load %arg5[%c0_9, %c0_10] : memref<10x1xf32, #tpu.memory_space<vmem>>, vector<10x1xf32>
    %11 = vector.broadcast %10 : vector<10x1xf32> to vector<10x256xf32>
    %12 = arith.addf %9, %11 : vector<10x256xf32>
    %c0_11 = arith.constant 0 : index
    %c0_12 = arith.constant 0 : index
    %13 = vector.load %arg6[%c0_11, %c0_12] : memref<10x256xf32, #tpu.memory_space<vmem>>, vector<10x256xf32>
    tpu.vector_store %arg6[%c0_11, %c0_12], %12 {strides = array<i32>} : memref<10x256xf32, #tpu.memory_space<vmem>>, vector<10x256xf32>,
    return
  }
  func.func @transform_0(%arg0: i32) -> (i32, i32) {
    %c0_i32 = arith.constant 0 : i32
    %c0_i32_0 = arith.constant 0 : i32
    return %c0_i32, %arg0 : i32, i32
  }
  func.func @transform_1(%arg0: i32) -> (i32, i32) {
    %c0_i32 = arith.constant 0 : i32
    %c0_i32_0 = arith.constant 0 : i32
    %c0_i32_1 = arith.constant 0 : i32
    return %c0_i32, %c0_i32_0 : i32, i32
  }
  func.func @transform_2(%arg0: i32) -> (i32, i32) {
    %c0_i32 = arith.constant 0 : i32
    %c0_i32_0 = arith.constant 0 : i32
    %c0_i32_1 = arith.constant 0 : i32
    return %c0_i32, %c0_i32_0 : i32, i32
  }
  func.func @transform_3(%arg0: i32) -> (i32, i32) {
    %c0_i32 = arith.constant 0 : i32
    %c0_i32_0 = arith.constant 0 : i32
    %c0_i32_1 = arith.constant 0 : i32
    return %c0_i32, %c0_i32_0 : i32, i32
  }
  func.func @transform_4(%arg0: i32) -> (i32, i32) {
    %c0_i32 = arith.constant 0 : i32
    %c0_i32_0 = arith.constant 0 : i32
    %c0_i32_1 = arith.constant 0 : i32
    return %c0_i32, %c0_i32_0 : i32, i32
  }
  func.func @transform_5(%arg0: i32) -> (i32, i32) {
    %c0_i32 = arith.constant 0 : i32
    %c0_i32_0 = arith.constant 0 : i32
    return %c0_i32, %arg0 : i32, i32
  }
}

</mosaic_0001>

<llo_original>
// kernel: binary_selection_net.1
$region0: #{binary_selection_net.1}
  #allocation0 [shape = 'u32[]', space=smem, size = 0x4, offset = 0x4, fixed_abs, tag = 'smem constant byte address 0x4 - core index']
  #allocation1 [shape = 'u32[144,128]{1,0:T(1,128)}', space=vmem, size = 0x12000, scoped, tag = 'internal scratch']
  %s0 = inlined_call_operand.vmem [shape: f32[10,768], index: 0, kind: input, shape index: {}]
  %s1 = inlined_call_operand.vmem [shape: f32[64,10], index: 1, kind: input, shape index: {}]
  %s2 = inlined_call_operand.vmem [shape: f32[64,1], index: 2, kind: input, shape index: {}]
  %s3 = inlined_call_operand.vmem [shape: f32[10,64], index: 3, kind: input, shape index: {}]
  %s4 = inlined_call_operand.vmem [shape: f32[10,1], index: 4, kind: input, shape index: {}]
  %s5 = inlined_call_operand.vmem [shape: f32[10,768], index: 5, kind: output, shape index: {}]
  %s6 = sld [smem:[#allocation0]]
  $region95: #{binary_selection_net.1} parent=0
    _
  %s8 = ssub.s32 1, %s6
  %s9 = scalar_select 0, %s8, %s6
  $region1: #{binary_selection_net.1} parent=0
    #allocation2 [shape = 'u8[32768]{0}', space=vmem, size = 0x8000, scoped, tag = 'input window, operand 0']
    #allocation3 [shape = 'u8[32768]{0}', space=vmem, size = 0x8000, scoped, tag = 'output window, operand 0']
    loop: start=0, step=1, limit=5
    $region2: #{binary_selection_net.1} parent=1 // loop_pre_header
      _
    $region3: #{binary_selection_net.1} parent=1 // loop_header
      %s11 = sphi 0, %s15
      %p12 = scmp.ge.s32.totalorder %s11, 5
      %s21 = sphi 0, %s23
      %s24 = sphi 0, %s21
      %s25 = sphi 0, %s24
      %s41 = sphi 0, %s25
      %s45 = sphi 0, %s45
      %s47 = sphi 0, %s45
      %s48 = sphi 0, %s47
      %s62 = sphi 0, %s48
      %s66 = sphi 0, %s66
      %s68 = sphi 0, %s66
      %s69 = sphi 0, %s68
      %s83 = sphi 0, %s69
      %s87 = sphi 0, %s87
      %s89 = sphi 0, %s87
      %s90 = sphi 0, %s89
      %s104 = sphi 0, %s90
      %s108 = sphi 0, %s108
      %s110 = sphi 0, %s108
      %s111 = sphi 0, %s110
      %s125 = sphi 0, %s111
      %s131 = sphi 0, %s133
      %s134 = sphi 0, %s131
      %s135 = sphi 0, %s134
      %s151 = sphi 0, %s135
    $region4: #{binary_selection_net.1} parent=1 // loop_header_branch
      %14 = sbr.rel (%p12) target = $region8
    $region5: #{binary_selection_net.1} parent=1 // loop_body
      %s16 = ssub.s32 %s11, 1
      %s17 = ssub.s32 %s11, 2
      %s18 = sadd.s32 %s11, 1
      %s19 = ssub.s32 %s11, %s18
      %p20 = scmp.eq.s32.totalorder %s19, 0
      %s22 = sadd.s32 %s21, 1
      %s23 = scalar_select %p20, %s21, %s22
      %p26 = pneg %p20
      %p27 = scmp.eq.s32.totalorder %s11, 2
      %p28 = por %p26, %p27
      %p29 = scmp.ne.s32.totalorder %s21, %s24
      %p30 = scmp.eq.s32.totalorder %s11, 0
      %p31 = por %p29, %p30
      %p32 = scmp.ne.s32.totalorder %s21, %s24
      %p33 = scmp.eq.s32.totalorder %s16, 2
      %p34 = por %p32, %p33
      %p35 = scmp.ne.s32.totalorder %s24, %s25
      %p36 = scmp.eq.s32.totalorder %s16, 0
      %p37 = por %p35, %p36
      %p38 = scmp.ne.s32.totalorder %s24, %s25
      %p39 = scmp.eq.s32.totalorder %s17, 2
      %p40 = por %p38, %p39
      %p42 = scmp.ne.s32.totalorder %s25, %s41
      %p43 = scmp.eq.s32.totalorder %s17, 0
      %p44 = por %p42, %p43
      %s46 = sadd.s32 %s45, 1
      %p49 = scmp.eq.s32.totalorder %s11, 2
      %p50 = scmp.ne.s32.totalorder %s45, %s47
      %p51 = scmp.eq.s32.totalorder %s11, 0
      %p52 = por %p50, %p51
      %p53 = scmp.ne.s32.totalorder %s45, %s47
      %p54 = scmp.eq.s32.totalorder %s16, 2
      %p55 = por %p53, %p54
      %p56 = scmp.ne.s32.totalorder %s47, %s48
      %p57 = scmp.eq.s32.totalorder %s16, 0
      %p58 = por %p56, %p57
      %p59 = scmp.ne.s32.totalorder %s47, %s48
      %p60 = scmp.eq.s32.totalorder %s17, 2
      %p61 = por %p59, %p60
      %p63 = scmp.ne.s32.totalorder %s48, %s62
      %p64 = scmp.eq.s32.totalorder %s17, 0
      %p65 = por %p63, %p64
      %s67 = sadd.s32 %s66, 1
      %p70 = scmp.eq.s32.totalorder %s11, 2
      %p71 = scmp.ne.s32.totalorder %s66, %s68
      %p72 = scmp.eq.s32.totalorder %s11, 0
      %p73 = por %p71, %p72
      %p74 = scmp.ne.s32.totalorder %s66, %s68
      %p75 = scmp.eq.s32.totalorder %s16, 2
      %p76 = por %p74, %p75
      %p77 = scmp.ne.s32.totalorder %s68, %s69
      %p78 = scmp.eq.s32.totalorder %s16, 0
      %p79 = por %p77, %p78
      %p80 = scmp.ne.s32.totalorder %s68, %s69
      %p81 = scmp.eq.s32.totalorder %s17, 2
      %p82 = por %p80, %p81
      %p84 = scmp.ne.s32.totalorder %s69, %s83
      %p85 = scmp.eq.s32.totalorder %s17, 0
      %p86 = por %p84, %p85
      %s88 = sadd.s32 %s87, 1
      %p91 = scmp.eq.s32.totalorder %s11, 2
      %p92 = scmp.ne.s32.totalorder %s87, %s89
      %p93 = scmp.eq.s32.totalorder %s11, 0
      %p94 = por %p92, %p93
      %p95 = scmp.ne.s32.totalorder %s87, %s89
      %p96 = scmp.eq.s32.totalorder %s16, 2
      %p97 = por %p95, %p96
      %p98 = scmp.ne.s32.totalorder %s89, %s90
      %p99 = scmp.eq.s32.totalorder %s16, 0
      %p100 = por %p98, %p99
      %p101 = scmp.ne.s32.totalorder %s89, %s90
      %p102 = scmp.eq.s32.totalorder %s17, 2
      %p103 = por %p101, %p102
      %p105 = scmp.ne.s32.totalorder %s90, %s104
      %p106 = scmp.eq.s32.totalorder %s17, 0
      %p107 = por %p105, %p106
      %s109 = sadd.s32 %s108, 1
      %p112 = scmp.eq.s32.totalorder %s11, 2
      %p113 = scmp.ne.s32.totalorder %s108, %s110
      %p114 = scmp.eq.s32.totalorder %s11, 0
      %p115 = por %p113, %p114
      %p116 = scmp.ne.s32.totalorder %s108, %s110
      %p117 = scmp.eq.s32.totalorder %s16, 2
      %p118 = por %p116, %p117
      %p119 = scmp.ne.s32.totalorder %s110, %s111
      %p120 = scmp.eq.s32.totalorder %s16, 0
      %p121 = por %p119, %p120
      %p122 = scmp.ne.s32.totalorder %s110, %s111
      %p123 = scmp.eq.s32.totalorder %s17, 2
      %p124 = por %p122, %p123
      %p126 = scmp.ne.s32.totalorder %s111, %s125
      %p127 = scmp.eq.s32.totalorder %s17, 0
      %p128 = por %p126, %p127
      %s129 = ssub.s32 %s11, %s18
      %p130 = scmp.eq.s32.totalorder %s129, 0
      %s132 = sadd.s32 %s131, 1
      %s133 = scalar_select %p130, %s131, %s132
      %p136 = pneg %p130
      %p137 = scmp.eq.s32.totalorder %s11, 2
      %p138 = por %p136, %p137
      %p139 = scmp.ne.s32.totalorder %s131, %s134
      %p140 = scmp.eq.s32.totalorder %s11, 0
      %p141 = por %p139, %p140
      %p142 = scmp.ne.s32.totalorder %s131, %s134
      %p143 = scmp.eq.s32.totalorder %s16, 2
      %p144 = por %p142, %p143
      %p145 = scmp.ne.s32.totalorder %s134, %s135
      %p146 = scmp.eq.s32.totalorder %s16, 0
      %p147 = por %p145, %p146
      %p148 = scmp.ne.s32.totalorder %s134, %s135
      %p149 = scmp.eq.s32.totalorder %s17, 2
      %p150 = por %p148, %p149
      %p152 = scmp.ne.s32.totalorder %s135, %s151
      %p153 = scmp.eq.s32.totalorder %s17, 0
      %p154 = por %p152, %p153
      %p155 = scmp.le.s32.totalorder 1, %s11
      %p156 = scmp.lt.s32.totalorder %s11, 4
      %p157 = pnand %p155, %p156
      %p158 = pneg %p157
      // Predicated region
      $region9: #{binary_selection_net.1} parent=5 // pred_check
        _
      $region10: #{binary_selection_net.1} parent=5 // pred_check_branch
        %160 = sbr.rel (%p157) target = $region12
      $region11: #{binary_selection_net.1} parent=5 // pred_region
        %s161 = ssub.s32 %s11, 1
        // Predicated region
        $region13: #{binary_selection_net.1} parent=11 // pred_check
          %p162 = pneg %p58
        $region14: #{binary_selection_net.1} parent=11 // pred_check_branch
          %164 = sbr.rel (%p162) target = $region16
        $region15: #{binary_selection_net.1} parent=11 // pred_region
          _
        $region16: #{binary_selection_net.1} parent=11 // pred_fallthru
          _
        // Predicated region
        $region17: #{binary_selection_net.1} parent=11 // pred_check
          %p165 = pneg %p79
        $region18: #{binary_selection_net.1} parent=11 // pred_check_branch
          %167 = sbr.rel (%p165) target = $region20
        $region19: #{binary_selection_net.1} parent=11 // pred_region
          _
        $region20: #{binary_selection_net.1} parent=11 // pred_fallthru
          _
        // Predicated region
        $region21: #{binary_selection_net.1} parent=11 // pred_check
          %p168 = pneg %p100
        $region22: #{binary_selection_net.1} parent=11 // pred_check_branch
          %170 = sbr.rel (%p168) target = $region24
        $region23: #{binary_selection_net.1} parent=11 // pred_region
          _
        $region24: #{binary_selection_net.1} parent=11 // pred_fallthru
          _
        // Predicated region
        $region25: #{binary_selection_net.1} parent=11 // pred_check
          %p171 = pneg %p121
        $region26: #{binary_selection_net.1} parent=11 // pred_check_branch
          %173 = sbr.rel (%p171) target = $region28
        $region27: #{binary_selection_net.1} parent=11 // pred_region
          _
        $region28: #{binary_selection_net.1} parent=11 // pred_fallthru
          _
      $region12: #{binary_selection_net.1} parent=5 // pred_fallthru
        _
      %p174 = scmp.lt.s32.totalorder %s11, 3
      // Predicated region
      $region29: #{binary_selection_net.1} parent=5 // pred_check
        %p175 = pneg %p174
      $region30: #{binary_selection_net.1} parent=5 // pred_check_branch
        %177 = sbr.rel (%p175) target = $region32
      $region31: #{binary_selection_net.1} parent=5 // pred_region
        // Predicated region
        $region33: #{binary_selection_net.1} parent=31 // pred_check
          %p178 = pneg %p31
        $region34: #{binary_selection_net.1} parent=31 // pred_check_branch
          %180 = sbr.rel (%p178) target = $region36
        $region35: #{binary_selection_net.1} parent=31 // pred_region
          %s181 = sand.u32 %s21, 1
          %s182 = sand.u32 %s21, 1
          %s183 = smul.addr %s182, 32
          %s184 = scalar_lea.vmem [#allocation2], %s183
          %s185 = smul.u32 2, %s11
          %s186 = smul.addr %s185, 8
          %s187 = scalar_lea.vmem %s0, %s186
          // Predicated region
          $region37: #{binary_selection_net.1} parent=35 // pred_check
            _
          $region38: #{binary_selection_net.1} parent=35 // pred_check_branch
            %189 = sbr.rel (0) target = $region40
          $region39: #{binary_selection_net.1} parent=35 // pred_region
            // Predicated region
            $region41: #{binary_selection_net.1} parent=39 // pred_check
              _
            $region42: #{binary_selection_net.1} parent=39 // pred_check_branch
              %191 = sbr.rel (0) target = $region44
            $region43: #{binary_selection_net.1} parent=39 // pred_region
              loop: start=0, step=1, limit=1
              $region45: #{binary_selection_net.1} parent=43 // loop_pre_header
                _
              $region46: #{binary_selection_net.1} parent=43 // loop_header
                %s193 = sphi 0, %s197
                %p194 = scmp.ge.s32.totalorder %s193, 1
                %s198 = sphi %s187, %s187
                %s199 = sphi %s184, %s184
              $region47: #{binary_selection_net.1} parent=43 // loop_header_branch
                %196 = sbr.rel (%p194) target = $region51
              $region48: #{binary_selection_net.1} parent=43 // loop_body
                %v200 = vld [vmem:[%s198] sm:$0xff]
                %201 = vst [vmem:[%s199] sm:$0xff] %v200
                %v202 = vld [vmem:[%s198 + $0x8] sm:$0xff]
                %203 = vst [vmem:[%s199 + $0x8] sm:$0xff] %v202
                %v204 = vld [vmem:[%s198 + $0x30] sm:$0xff]
                %205 = vst [vmem:[%s199 + $0x10] sm:$0xff] %v204
                %v206 = vld [vmem:[%s198 + $0x38] sm:$0xff]
                %207 = vst [vmem:[%s199 + $0x18] sm:$0xff] %v206
              $region49: #{binary_selection_net.1} parent=43 // loop_footer
                %s197 = sadd.s32 1, %s193
              $region50: #{binary_selection_net.1} parent=43 // loop_footer_branch
                %192 = sbr.rel target = $region46
              $region51: #{binary_selection_net.1} parent=43 // loop_exit
                _
            $region44: #{binary_selection_net.1} parent=39 // pred_fallthru
              _
            // Predicated region
            $region52: #{binary_selection_net.1} parent=39 // pred_check
              _
            $region53: #{binary_selection_net.1} parent=39 // pred_check_branch
              %209 = sbr.rel target = $region55
            $region54: #{binary_selection_net.1} parent=39 // pred_region
              _
            $region55: #{binary_selection_net.1} parent=39 // pred_fallthru
              _
          $region40: #{binary_selection_net.1} parent=35 // pred_fallthru
            _
          %210 = vnop
        $region36: #{binary_selection_net.1} parent=31 // pred_fallthru
          _
      $region32: #{binary_selection_net.1} parent=5 // pred_fallthru
        _
      %p211 = scmp.le.s32.totalorder 1, %s11
      %p212 = scmp.lt.s32.totalorder %s11, 4
      %p213 = pnand %p211, %p212
      %p214 = pneg %p213
      // Predicated region
      $region56: #{binary_selection_net.1} parent=5 // pred_check
        _
      $region57: #{binary_selection_net.1} parent=5 // pred_check_branch
        %216 = sbr.rel (%p213) target = $region59
      $region58: #{binary_selection_net.1} parent=5 // pred_region
        %s217 = ssub.s32 %s11, 1
        %s218 = sand.u32 %s24, 1
        %s219 = sand.u32 %s24, 1
        %s220 = smul.addr %s219, 32
        %s221 = scalar_lea.vmem [#allocation2], %s220
        // Predicated region
        $region60: #{binary_selection_net.1} parent=58 // pred_check
          %p222 = pneg %p37
        $region61: #{binary_selection_net.1} parent=58 // pred_check_branch
          %224 = sbr.rel (%p222) target = $region63
        $region62: #{binary_selection_net.1} parent=58 // pred_region
          _
        $region63: #{binary_selection_net.1} parent=58 // pred_fallthru
          _
        %s225 = sand.u32 %s24, 1
        %s226 = sand.u32 %s24, 1
        %s227 = smul.addr %s226, 32
        %s228 = scalar_lea.vmem [#allocation2], %s227
        %p229 = pneg %p37
        %p230 = pneg %p34
        %p231 = pneg %p58
        %p232 = pneg %p55
        %p233 = pneg %p79
        %p234 = pneg %p76
        %p235 = pneg %p100
        %p236 = pneg %p97
        %p237 = pneg %p121
        %p238 = pneg %p118
        %p239 = pneg %p147
        %p240 = pneg %p144
        %s241 = sand.u32 %s134, 1
        %s242 = sand.u32 %s134, 1
        %s243 = smul.addr %s242, 32
        %s244 = scalar_lea.vmem [#allocation3], %s243
        %s245 = smul.u32 2, %s16
        %s246 = smul.u32 2, %s16
        %v247 = vld [vmem:[%s1] sm:$0xff]
        %v248 = vld [vmem:[%s1 + $0x8] sm:$0xff]
        %v249 = vld [vmem:[%s1 + $0x10] sm:$0xff]
        %v250 = vld [vmem:[%s1 + $0x18] sm:$0xff]
        %v251 = vld [vmem:[%s1 + $0x20] sm:$0xff]
        %v252 = vld [vmem:[%s1 + $0x28] sm:$0xff]
        %v253 = vld [vmem:[%s1 + $0x30] sm:$0xff]
        %v254 = vld [vmem:[%s1 + $0x38] sm:$0xff]
        %v255 = vld [vmem:[%s221] sm:$0xff]
        %v256 = vld [vmem:[%s221 + $0x8] sm:$0xff]
        %v257 = vld [vmem:[%s221 + $0x10] sm:$0x3]
        %v258 = vld [vmem:[%s221 + $0x18] sm:$0x3]
        %v259 = vld [vmem:[%s2] sm:$0xff]
        %v260 = vld [vmem:[%s2 + $0x8] sm:$0xff]
        %v261 = vld [vmem:[%s2 + $0x10] sm:$0xff]
        %v262 = vld [vmem:[%s2 + $0x18] sm:$0xff]
        %v263 = vld [vmem:[%s2 + $0x20] sm:$0xff]
        %v264 = vld [vmem:[%s2 + $0x28] sm:$0xff]
        %v265 = vld [vmem:[%s2 + $0x30] sm:$0xff]
        %v266 = vld [vmem:[%s2 + $0x38] sm:$0xff]
        %268 = vset.pattern.permute.xlu0 0
        %269 = vperm.xlu0 %268, %v259
        %v270 = vpop.permute.xlu0 %269
        %273 = vset.pattern.permute.xlu0 0
        %274 = vperm.xlu0 %273, %v260
        %v275 = vpop.permute.xlu0 %274
        %278 = vset.pattern.permute.xlu0 0
        %279 = vperm.xlu0 %278, %v261
        %v280 = vpop.permute.xlu0 %279
        %283 = vset.pattern.permute.xlu0 0
        %284 = vperm.xlu0 %283, %v262
        %v285 = vpop.permute.xlu0 %284
        %288 = vset.pattern.permute.xlu0 0
        %289 = vperm.xlu0 %288, %v263
        %v290 = vpop.permute.xlu0 %289
        %293 = vset.pattern.permute.xlu0 0
        %294 = vperm.xlu0 %293, %v264
        %v295 = vpop.permute.xlu0 %294
        %298 = vset.pattern.permute.xlu0 0
        %299 = vperm.xlu0 %298, %v265
        %v300 = vpop.permute.xlu0 %299
        %303 = vset.pattern.permute.xlu0 0
        %304 = vperm.xlu0 %303, %v266
        %v305 = vpop.permute.xlu0 %304
        %vm307 = vcmask 80896
        %v309 = vsel %vm307, %v247, 0
        %v312 = vsel %vm307, %v248, 0
        %v315 = vsel %vm307, %v249, 0
        %v318 = vsel %vm307, %v250, 0
        %v321 = vsel %vm307, %v251, 0
        %v324 = vsel %vm307, %v252, 0
        %v327 = vsel %vm307, %v253, 0
        %v330 = vsel %vm307, %v254, 0
        %vm332 = vcmask 1041408
        %v334 = vsel %vm332, %v257, 0
        %v337 = vsel %vm332, %v258, 0
        %339 = vmatprep.subr.mxu0 0.0
        %340 = vmatpush1.msra.mxu0 0.0
        %341 = vmatprep.subr.mxu0 0.0
        %342 = vmatpush1.msra.mxu0 0.0
        %343 = vmatprep.subr.mxu0 0.0
        %344 = vmatpush1.msra.mxu0 0.0
        %345 = vmatprep.subr.mxu0 0.0
        %346 = vmatpush1.msra.mxu0 0.0
        %347 = vmatprep.subr.mxu0 0.0
        %348 = vmatpush1.msra.mxu0 0.0
        %349 = vmatprep.subr.mxu0 0.0
        %350 = vmatpush1.msra.mxu0 0.0
        %351 = vmatprep.subr.mxu0 0.0
        %352 = vmatpush1.msra.mxu0 0.0
        %353 = vmatprep.subr.mxu0 0.0
        %354 = vmatpush1.msra.mxu0 0.0
        %355 = vmatprep.subr.mxu0 0.0
        %356 = vmatpush1.msra.mxu0 0.0
        %357 = vmatprep.subr.mxu0 0.0
        %358 = vmatpush1.msra.mxu0 0.0
        %359 = vmatprep.subr.mxu0 0.0
        %360 = vmatpush1.msra.mxu0 0.0
        %361 = vmatprep.subr.mxu0 0.0
        %362 = vmatpush1.msra.mxu0 0.0
        %363 = vmatprep.subr.mxu0 0.0
        %364 = vmatpush1.msra.mxu0 0.0
        %365 = vmatprep.subr.mxu0 0.0
        %366 = vmatpush1.msra.mxu0 0.0
        %367 = vmatprep.subr.mxu0 %v337
        %368 = vmatpush1.msra.mxu0 %v334
        %369 = vmatprep.subr.mxu0 %v256
        %370 = vmatpush1.msra.mxu0 %v255
        %371 = vmatprep.subr.mxu0 0.0
        %372 = vmatpush2.msra.mxu0 0.0
        %373 = vmatprep.subr.mxu0 0.0
        %374 = vmatpush2.msra.mxu0 0.0
        %375 = vmatprep.subr.mxu0 0.0
        %376 = vmatpush2.msra.mxu0 0.0
        %377 = vmatprep.subr.mxu0 0.0
        %378 = vmatpush2.msra.mxu0 0.0
        %379 = vmatprep.subr.mxu0 0.0
        %380 = vmatpush2.msra.mxu0 0.0
        %381 = vmatprep.subr.mxu0 0.0
        %382 = vmatpush2.msra.mxu0 0.0
        %383 = vmatprep.subr.mxu0 0.0
        %384 = vmatpush2.msra.mxu0 0.0
        %385 = vmatprep.subr.mxu0 0.0
        %386 = vmatpush2.msra.mxu0 0.0
        %387 = vmatprep.subr.mxu0 0.0
        %388 = vmatpush2.msra.mxu0 0.0
        %389 = vmatprep.subr.mxu0 0.0
        %390 = vmatpush2.msra.mxu0 0.0
        %391 = vmatprep.subr.mxu0 0.0
        %392 = vmatpush2.msra.mxu0 0.0
        %393 = vmatprep.subr.mxu0 0.0
        %394 = vmatpush2.msra.mxu0 0.0
        %395 = vmatprep.subr.mxu0 0.0
        %396 = vmatpush2.msra.mxu0 0.0
        %397 = vmatprep.subr.mxu0 0.0
        %398 = vmatpush2.msra.mxu0 0.0
        %399 = vmatprep.subr.mxu0 0.0
        %400 = vmatpush2.msra.mxu0 0.0
        %401 = vmatprep.subr.mxu0 0.0
        %402 = vmatpush2.msra.mxu0 0.0
        %403 = vmatprep.mubr.f32.mxu0 0.0
        %404 = vmatmul.mubr.f32.gmra.mxu0 %v309
        %v405 = vpop.f32.mrf.mxu0
        %v406 = vadd.f32 %v270, %v405
        %v407 = vpop.f32.mrf.mxu0
        %v408 = vadd.f32 %v270, %v407
        %409 = vmatprep.mubr.f32.mxu0 0.0
        %410 = vmatmul.mubr.f32.gmra.mxu0 %v312
        %v411 = vpop.f32.mrf.mxu0
        %v412 = vadd.f32 %v275, %v411
        %v413 = vpop.f32.mrf.mxu0
        %v414 = vadd.f32 %v275, %v413
        %415 = vmatprep.mubr.f32.mxu0 0.0
        %416 = vmatmul.mubr.f32.gmra.mxu0 %v315
        %v417 = vpop.f32.mrf.mxu0
        %v418 = vadd.f32 %v280, %v417
        %v419 = vpop.f32.mrf.mxu0
        %v420 = vadd.f32 %v280, %v419
        %421 = vmatprep.mubr.f32.mxu0 0.0
        %422 = vmatmul.mubr.f32.gmra.mxu0 %v318
        %v423 = vpop.f32.mrf.mxu0
        %v424 = vadd.f32 %v285, %v423
        %v425 = vpop.f32.mrf.mxu0
        %v426 = vadd.f32 %v285, %v425
        %427 = vmatprep.mubr.f32.mxu0 0.0
        %428 = vmatmul.mubr.f32.gmra.mxu0 %v321
        %v429 = vpop.f32.mrf.mxu0
        %v430 = vadd.f32 %v290, %v429
        %v431 = vpop.f32.mrf.mxu0
        %v432 = vadd.f32 %v290, %v431
        %433 = vmatprep.mubr.f32.mxu0 0.0
        %434 = vmatmul.mubr.f32.gmra.mxu0 %v324
        %v435 = vpop.f32.mrf.mxu0
        %v436 = vadd.f32 %v295, %v435
        %v437 = vpop.f32.mrf.mxu0
        %v438 = vadd.f32 %v295, %v437
        %439 = vmatprep.mubr.f32.mxu0 0.0
        %440 = vmatmul.mubr.f32.gmra.mxu0 %v327
        %v441 = vpop.f32.mrf.mxu0
        %v442 = vadd.f32 %v300, %v441
        %v443 = vpop.f32.mrf.mxu0
        %v444 = vadd.f32 %v300, %v443
        %445 = vmatprep.mubr.f32.mxu0 0.0
        %446 = vmatmul.mubr.f32.gmra.mxu0 %v330
        %v447 = vpop.f32.mrf.mxu0
        %v448 = vadd.f32 %v305, %v447
        %v449 = vpop.f32.mrf.mxu0
        %v450 = vadd.f32 %v305, %v449
        %451 = vdwg.mxu0
        %v452 = vmax.f32 %v406, 0.0
        %v453 = vmax.f32 %v408, 0.0
        %v454 = vmax.f32 %v412, 0.0
        %v455 = vmax.f32 %v414, 0.0
        %v456 = vmax.f32 %v418, 0.0
        %v457 = vmax.f32 %v420, 0.0
        %v458 = vmax.f32 %v424, 0.0
        %v459 = vmax.f32 %v426, 0.0
        %v460 = vmax.f32 %v430, 0.0
        %v461 = vmax.f32 %v432, 0.0
        %v462 = vmax.f32 %v436, 0.0
        %v463 = vmax.f32 %v438, 0.0
        %v464 = vmax.f32 %v442, 0.0
        %v465 = vmax.f32 %v444, 0.0
        %v466 = vmax.f32 %v448, 0.0
        %v467 = vmax.f32 %v450, 0.0
        %v468 = vld [vmem:[%s3] sm:$0xff]
        %v469 = vld [vmem:[%s3 + $0x8] sm:$0x3]
        %v470 = vld [vmem:[%s4] sm:$0xff]
        %v471 = vld [vmem:[%s4 + $0x8] sm:$0x3]
        %473 = vset.pattern.permute.xlu0 0
        %474 = vperm.xlu0 %473, %v470
        %v475 = vpop.permute.xlu0 %474
        %478 = vset.pattern.permute.xlu0 0
        %479 = vperm.xlu0 %478, %v471
        %v480 = vpop.permute.xlu0 %479
        %vm482 = vcmask 523264
        %v484 = vsel %vm482, %v468, 0
        %v487 = vsel %vm482, %v469, 0
        %489 = vmatprep.subr.mxu0 0.0
        %490 = vmatpush1.msra.mxu0 0.0
        %491 = vmatprep.subr.mxu0 0.0
        %492 = vmatpush1.msra.mxu0 0.0
        %493 = vmatprep.subr.mxu0 0.0
        %494 = vmatpush1.msra.mxu0 0.0
        %495 = vmatprep.subr.mxu0 0.0
        %496 = vmatpush1.msra.mxu0 0.0
        %497 = vmatprep.subr.mxu0 0.0
        %498 = vmatpush1.msra.mxu0 0.0
        %499 = vmatprep.subr.mxu0 0.0
        %500 = vmatpush1.msra.mxu0 0.0
        %501 = vmatprep.subr.mxu0 0.0
        %502 = vmatpush1.msra.mxu0 0.0
        %503 = vmatprep.subr.mxu0 0.0
        %504 = vmatpush1.msra.mxu0 0.0
        %505 = vmatprep.subr.mxu0 %v467
        %506 = vmatpush1.msra.mxu0 %v466
        %507 = vmatprep.subr.mxu0 %v465
        %508 = vmatpush1.msra.mxu0 %v464
        %509 = vmatprep.subr.mxu0 %v463
        %510 = vmatpush1.msra.mxu0 %v462
        %511 = vmatprep.subr.mxu0 %v461
        %512 = vmatpush1.msra.mxu0 %v460
        %513 = vmatprep.subr.mxu0 %v459
        %514 = vmatpush1.msra.mxu0 %v458
        %515 = vmatprep.subr.mxu0 %v457
        %516 = vmatpush1.msra.mxu0 %v456
        %517 = vmatprep.subr.mxu0 %v455
        %518 = vmatpush1.msra.mxu0 %v454
        %519 = vmatprep.subr.mxu0 %v453
        %520 = vmatpush1.msra.mxu0 %v452
        %521 = vmatprep.subr.mxu0 0.0
        %522 = vmatpush2.msra.mxu0 0.0
        %523 = vmatprep.subr.mxu0 0.0
        %524 = vmatpush2.msra.mxu0 0.0
        %525 = vmatprep.subr.mxu0 0.0
        %526 = vmatpush2.msra.mxu0 0.0
        %527 = vmatprep.subr.mxu0 0.0
        %528 = vmatpush2.msra.mxu0 0.0
        %529 = vmatprep.subr.mxu0 0.0
        %530 = vmatpush2.msra.mxu0 0.0
        %531 = vmatprep.subr.mxu0 0.0
        %532 = vmatpush2.msra.mxu0 0.0
        %533 = vmatprep.subr.mxu0 0.0
        %534 = vmatpush2.msra.mxu0 0.0
        %535 = vmatprep.subr.mxu0 0.0
        %536 = vmatpush2.msra.mxu0 0.0
        %537 = vmatprep.subr.mxu0 0.0
        %538 = vmatpush2.msra.mxu0 0.0
        %539 = vmatprep.subr.mxu0 0.0
        %540 = vmatpush2.msra.mxu0 0.0
        %541 = vmatprep.subr.mxu0 0.0
        %542 = vmatpush2.msra.mxu0 0.0
        %543 = vmatprep.subr.mxu0 0.0
        %544 = vmatpush2.msra.mxu0 0.0
        %545 = vmatprep.subr.mxu0 0.0
        %546 = vmatpush2.msra.mxu0 0.0
        %547 = vmatprep.subr.mxu0 0.0
        %548 = vmatpush2.msra.mxu0 0.0
        %549 = vmatprep.subr.mxu0 0.0
        %550 = vmatpush2.msra.mxu0 0.0
        %551 = vmatprep.subr.mxu0 0.0
        %552 = vmatpush2.msra.mxu0 0.0
        %553 = vmatprep.mubr.f32.mxu0 0.0
        %554 = vmatmul.mubr.f32.gmra.mxu0 %v484
        %v555 = vpop.f32.mrf.mxu0
        %v556 = vadd.f32 %v475, %v555
        %v557 = vpop.f32.mrf.mxu0
        %v558 = vadd.f32 %v475, %v557
        %559 = vmatprep.mubr.f32.mxu0 0.0
        %560 = vmatmul.mubr.f32.gmra.mxu0 %v487
        %v561 = vpop.f32.mrf.mxu0
        %v562 = vadd.f32 %v480, %v561
        %v563 = vpop.f32.mrf.mxu0
        %v564 = vadd.f32 %v480, %v563
        %565 = vdwg.mxu0
        %566 = vst [vmem:[%s244] sm:$0xff] %v556
        %567 = vst [vmem:[%s244 + $0x8] sm:$0xff] %v558
        %568 = vst [vmem:[%s244 + $0x10] sm:$0x3] %v562
        %569 = vst [vmem:[%s244 + $0x18] sm:$0x3] %v564
        %s570 = sand.u32 %s134, 1
        %s571 = sand.u32 %s134, 1
        %s572 = smul.addr %s571, 32
        %s573 = scalar_lea.vmem [#allocation3], %s572
        // Predicated region
        $region64: #{binary_selection_net.1} parent=58 // pred_check
          %p574 = pneg %p144
        $region65: #{binary_selection_net.1} parent=58 // pred_check_branch
          %576 = sbr.rel (%p574) target = $region67
        $region66: #{binary_selection_net.1} parent=58 // pred_region
          %s577 = smul.u32 2, %s16
          %s578 = smul.addr %s577, 8
          %s579 = scalar_lea.vmem %s5, %s578
          // Predicated region
          $region68: #{binary_selection_net.1} parent=66 // pred_check
            _
          $region69: #{binary_selection_net.1} parent=66 // pred_check_branch
            %581 = sbr.rel (0) target = $region71
          $region70: #{binary_selection_net.1} parent=66 // pred_region
            // Predicated region
            $region72: #{binary_selection_net.1} parent=70 // pred_check
              _
            $region73: #{binary_selection_net.1} parent=70 // pred_check_branch
              %583 = sbr.rel (0) target = $region75
            $region74: #{binary_selection_net.1} parent=70 // pred_region
              loop: start=0, step=1, limit=1
              $region76: #{binary_selection_net.1} parent=74 // loop_pre_header
                _
              $region77: #{binary_selection_net.1} parent=74 // loop_header
                %s585 = sphi 0, %s589
                %p586 = scmp.ge.s32.totalorder %s585, 1
                %s590 = sphi %s573, %s573
                %s591 = sphi %s579, %s579
              $region78: #{binary_selection_net.1} parent=74 // loop_header_branch
                %588 = sbr.rel (%p586) target = $region82
              $region79: #{binary_selection_net.1} parent=74 // loop_body
                %v592 = vld [vmem:[%s590] sm:$0xff]
                %593 = vst [vmem:[%s591] sm:$0xff] %v592
                %v594 = vld [vmem:[%s590 + $0x8] sm:$0xff]
                %595 = vst [vmem:[%s591 + $0x8] sm:$0xff] %v594
                %v596 = vld [vmem:[%s590 + $0x10] sm:$0xff]
                %597 = vst [vmem:[%s591 + $0x30] sm:$0xff] %v596
                %v598 = vld [vmem:[%s590 + $0x18] sm:$0xff]
                %599 = vst [vmem:[%s591 + $0x38] sm:$0xff] %v598
              $region80: #{binary_selection_net.1} parent=74 // loop_footer
                %s589 = sadd.s32 1, %s585
              $region81: #{binary_selection_net.1} parent=74 // loop_footer_branch
                %584 = sbr.rel target = $region77
              $region82: #{binary_selection_net.1} parent=74 // loop_exit
                _
            $region75: #{binary_selection_net.1} parent=70 // pred_fallthru
              _
            // Predicated region
            $region83: #{binary_selection_net.1} parent=70 // pred_check
              _
            $region84: #{binary_selection_net.1} parent=70 // pred_check_branch
              %601 = sbr.rel target = $region86
            $region85: #{binary_selection_net.1} parent=70 // pred_region
              _
            $region86: #{binary_selection_net.1} parent=70 // pred_fallthru
              _
          $region71: #{binary_selection_net.1} parent=66 // pred_fallthru
            _
          %602 = vnop
        $region67: #{binary_selection_net.1} parent=58 // pred_fallthru
          _
      $region59: #{binary_selection_net.1} parent=5 // pred_fallthru
        _
      %p603 = scmp.le.s32.totalorder 2, %s11
      // Predicated region
      $region87: #{binary_selection_net.1} parent=5 // pred_check
        %p604 = pneg %p603
      $region88: #{binary_selection_net.1} parent=5 // pred_check_branch
        %606 = sbr.rel (%p604) target = $region90
      $region89: #{binary_selection_net.1} parent=5 // pred_region
        %s607 = ssub.s32 %s11, 2
        // Predicated region
        $region91: #{binary_selection_net.1} parent=89 // pred_check
          %p608 = pneg %p150
        $region92: #{binary_selection_net.1} parent=89 // pred_check_branch
          %610 = sbr.rel (%p608) target = $region94
        $region93: #{binary_selection_net.1} parent=89 // pred_region
          %s611 = sand.u32 %s135, 1
          %s612 = sand.u32 %s135, 1
          %s613 = smul.addr %s612, 32
          %s614 = scalar_lea.vmem [#allocation3], %s613
        $region94: #{binary_selection_net.1} parent=89 // pred_fallthru
          _
      $region90: #{binary_selection_net.1} parent=5 // pred_fallthru
        _
    $region6: #{binary_selection_net.1} parent=1 // loop_footer
      %s15 = sadd.s32 1, %s11
    $region7: #{binary_selection_net.1} parent=1 // loop_footer_branch
      %10 = sbr.rel target = $region3
    $region8: #{binary_selection_net.1} parent=1 // loop_exit
      _

</llo_original>
